<compile_context>
chip_gen: v5e
topology: v5e:2x2
jax: 0.10.0
libtpu: 0.0.40
codegen_flags: <defaults>
</compile_context>

<pallas_src>
import jax
import jax.numpy as jnp
from jax import lax
from jax.experimental import pallas as pl
from jax.experimental.pallas import tpu as pltpu


def _j_loss_kernel(pred_ref, gt_ref, out_ref):
    """One grid step processes TB batch samples; writes per-sample (J_p - J_g)^2.

    Perf changes vs. the previous version:
      * boundary sign-fields (sx, sy) are built ONCE per grid step and reused
        for both fields and every sample (no duplicated iota/compare work),
      * the four per-edge masked sums are fused into a single contribution
        field, and pred/gt are differenced BEFORE the reduction (sum is
        linear), so each sample needs exactly ONE full XLU reduction
        instead of eight,
      * no `zeros_like(u)` / per-edge `where` temporaries -> fewer live vregs,
      * several samples per grid step amortize the ~0.35us per-step overhead
        and give the DMA engine larger transfers,
      * output is per-sample (no scalar accumulator), so the batch grid axis
        is "parallel" and can shard across v7x's two TensorCores.
    """
    tb, _, h, w = pred_ref.shape

    # Boundary "sign" fields, built once per grid step:
    #   sx = +1 on the right edge (x = W-1), -1 on the left edge (x = 0)
    #   sy = +1 on the bottom edge (y = 0),  -1 on the top edge  (y = H-1)
    iw = lax.broadcasted_iota(jnp.int32, (1, h, w), 2)
    ih = lax.broadcasted_iota(jnp.int32, (1, h, w), 1)
    f1 = jnp.float32(1.0)
    f0 = jnp.float32(0.0)
    sx = jnp.where(iw == w - 1, f1, f0) - jnp.where(iw == 0, f1, f0)
    sy = jnp.where(ih == 0, f1, f0) - jnp.where(ih == h - 1, f1, f0)

    def contrib(u):
        # periodic central differences: rolls use the XLU slot, mults the VPU
        ux = 0.5 * (pltpu.roll(u, w - 1, axis=2) - pltpu.roll(u, 1, axis=2))
        uy = 0.5 * (pltpu.roll(u, h - 1, axis=1) - pltpu.roll(u, 1, axis=1))
        w_e = 0.5 * (ux * ux + uy * uy)
        # fused boundary contribution:
        #   right/left edges : +/- (W_e - ux*ux)
        #   bottom/top edges : +/- (uy*ux)
        return sx * (w_e - ux * ux) + sy * (uy * ux)

    tidx = lax.broadcasted_iota(jnp.int32, (1, tb), 1)
    row = jnp.zeros((1, tb), jnp.float32)
    for t in range(tb):  # tb is small and static -> fully unrolled
        p = pred_ref[t].astype(jnp.float32)   # (C, H, W)
        g = gt_ref[t].astype(jnp.float32)     # (C, H, W)
        # J_pred - J_gt == sum(contrib(p) - contrib(g))  -> single reduction
        jd = jnp.sum(contrib(p) - contrib(g))
        row = jnp.where(tidx == t, jd * jd, row)
    out_ref[...] = row


def _pick_block_batch(batch, per_sample_bytes,
                      vmem_budget_bytes=24 * 1024 * 1024, max_unroll=8):
    """Largest divisor of `batch` whose double-buffered working set fits VMEM.

    Working set per sample = 2 inputs x 2 pipeline buffers x C*H*W*itemsize.
    Budget (24 MiB) keeps the kernel under v7x's 32 MiB scoped-VMEM default.
    """
    fit = max(1, vmem_budget_bytes // (4 * per_sample_bytes))
    tb = min(batch, fit, max_unroll)
    while batch % tb:
        tb -= 1
    return tb


def j_integral_loss(predicted_image, ground_truth):
    """J-integral loss between predicted and ground-truth NCHW images."""
    assert predicted_image.shape == ground_truth.shape
    B, C, H, W = predicted_image.shape
    itemsize = jnp.dtype(predicted_image.dtype).itemsize
    tb = _pick_block_batch(B, C * H * W * itemsize)
    nblk = B // tb

    # TODO(synk): for large images, switch to a boundary-strip formulation
    #   (rows {0,1,H-2,H-1} plus lane-aligned column strips) so HBM traffic
    #   and VMEM drop from O(C*H*W) to O(C*(H+W)) per sample, and tile H.
    # TODO(synk): for W < 128 lanes are underfull; a lane-dense repack
    #   (fold C into lanes with segmented rolls) would help the toy-shape
    #   case but is unnecessary for realistic image widths (>= 128).
    per_sample = pl.pallas_call(
        _j_loss_kernel,
        out_shape=jax.ShapeDtypeStruct((nblk, tb), jnp.float32),
        grid_spec=pltpu.PrefetchScalarGridSpec(
            num_scalar_prefetch=0,
            grid=(nblk,),
            in_specs=[
                pl.BlockSpec((tb, C, H, W), lambda b: (b, 0, 0, 0)),
                pl.BlockSpec((tb, C, H, W), lambda b: (b, 0, 0, 0)),
            ],
            out_specs=pl.BlockSpec((1, tb), lambda b: (b, 0)),
        ),
        compiler_params=pltpu.CompilerParams(
            # per-sample output blocks -> no accumulator race, megacore-safe
            dimension_semantics=("parallel",),
            vmem_limit_bytes=32 * 1024 * 1024,
        ),
    )(predicted_image, ground_truth)

    # batch mean of (J_pred - J_gt)^2 done in the wrapper
    return jnp.mean(per_sample)


if __name__ == "__main__":
    key = jax.random.PRNGKey(0)
    k1, k2 = jax.random.split(key)

    # small shapes consistent with the module's image inputs
    B, C, H, W = 2, 4, 16, 16
    predicted_image = jax.random.normal(k1, (B, C, H, W), dtype=jnp.float32)
    ground_truth = jax.random.normal(k2, (B, C, H, W), dtype=jnp.float32)

    loss = j_integral_loss(predicted_image, ground_truth)
    jax.block_until_ready(loss)
    print("KERNEL_OK")
</pallas_src>

<mosaic_0001>
module attributes {stable_mosaic.version = 11 : i64} {
  func.func @_j_loss_kernel(%arg0: i32, %arg1: memref<2x4x16x16xf32, #tpu.memory_space<vmem>>, %arg2: memref<2x4x16x16xf32, #tpu.memory_space<vmem>>, %arg3: memref<1x2xf32, #tpu.memory_space<vmem>>) attributes {dimension_semantics = [#tpu.dimension_semantics<parallel>], iteration_bounds = array<i64: 1>, scalar_prefetch = 0 : i64, scratch_operands = 0 : i64, tpu.core_type = #tpu.core_type<tc>, window_params = [{transform_indices = @transform_0, window_bounds = array<i64: 2, 4, 16, 16>}, {transform_indices = @transform_1, window_bounds = array<i64: 2, 4, 16, 16>}, {transform_indices = @transform_2, window_bounds = array<i64: 1, 2>}]} {
    %0 = tpu.iota {dimensions = array<i32: 2>} : vector<1x16x16xi32>
    %1 = tpu.iota {dimensions = array<i32: 1>} : vector<1x16x16xi32>
    %c15_i32 = arith.constant 15 : i32
    %2 = vector.broadcast %c15_i32 : i32 to vector<1x16x16xi32>
    %3 = arith.cmpi eq, %0, %2 : vector<1x16x16xi32>
    %cst = arith.constant 1.000000e+00 : f32
    %cst_0 = arith.constant 0.000000e+00 : f32
    %4 = vector.broadcast %cst : f32 to vector<1x16x16xf32>
    %5 = vector.broadcast %cst_0 : f32 to vector<1x16x16xf32>
    %6 = arith.select %3, %4, %5 : vector<1x16x16xi1>, vector<1x16x16xf32>
    %c0_i32 = arith.constant 0 : i32
    %7 = vector.broadcast %c0_i32 : i32 to vector<1x16x16xi32>
    %8 = arith.cmpi eq, %0, %7 : vector<1x16x16xi32>
    %cst_1 = arith.constant 1.000000e+00 : f32
    %cst_2 = arith.constant 0.000000e+00 : f32
    %9 = vector.broadcast %cst_1 : f32 to vector<1x16x16xf32>
    %10 = vector.broadcast %cst_2 : f32 to vector<1x16x16xf32>
    %11 = arith.select %8, %9, %10 : vector<1x16x16xi1>, vector<1x16x16xf32>
    %12 = arith.subf %6, %11 : vector<1x16x16xf32>
    %c0_i32_3 = arith.constant 0 : i32
    %13 = vector.broadcast %c0_i32_3 : i32 to vector<1x16x16xi32>
    %14 = arith.cmpi eq, %1, %13 : vector<1x16x16xi32>
    %cst_4 = arith.constant 1.000000e+00 : f32
    %cst_5 = arith.constant 0.000000e+00 : f32
    %15 = vector.broadcast %cst_4 : f32 to vector<1x16x16xf32>
    %16 = vector.broadcast %cst_5 : f32 to vector<1x16x16xf32>
    %17 = arith.select %14, %15, %16 : vector<1x16x16xi1>, vector<1x16x16xf32>
    %c15_i32_6 = arith.constant 15 : i32
    %18 = vector.broadcast %c15_i32_6 : i32 to vector<1x16x16xi32>
    %19 = arith.cmpi eq, %1, %18 : vector<1x16x16xi32>
    %cst_7 = arith.constant 1.000000e+00 : f32
    %cst_8 = arith.constant 0.000000e+00 : f32
    %20 = vector.broadcast %cst_7 : f32 to vector<1x16x16xf32>
    %21 = vector.broadcast %cst_8 : f32 to vector<1x16x16xf32>
    %22 = arith.select %19, %20, %21 : vector<1x16x16xi1>, vector<1x16x16xf32>
    %23 = arith.subf %17, %22 : vector<1x16x16xf32>
    %24 = tpu.iota {dimensions = array<i32: 1>} : vector<1x2xi32>
    %cst_9 = arith.constant 0.000000e+00 : f32
    %25 = vector.broadcast %cst_9 : f32 to vector<1x2xf32>
    %c0 = arith.constant 0 : index
    %c0_10 = arith.constant 0 : index
    %c0_11 = arith.constant 0 : index
    %c0_12 = arith.constant 0 : index
    %26 = vector.load %arg1[%c0, %c0_10, %c0_11, %c0_12] : memref<2x4x16x16xf32, #tpu.memory_space<vmem>>, vector<1x4x16x16xf32>
    %27 = vector.shape_cast %26 : vector<1x4x16x16xf32> to vector<4x16x16xf32>
    %c0_13 = arith.constant 0 : index
    %c0_14 = arith.constant 0 : index
    %c0_15 = arith.constant 0 : index
    %c0_16 = arith.constant 0 : index
    %28 = vector.load %arg2[%c0_13, %c0_14, %c0_15, %c0_16] : memref<2x4x16x16xf32, #tpu.memory_space<vmem>>, vector<1x4x16x16xf32>
    %29 = vector.shape_cast %28 : vector<1x4x16x16xf32> to vector<4x16x16xf32>
    %c15_i32_17 = arith.constant 15 : i32
    %30 = tpu.dynamic_rotate %27 by %c15_i32_17 dim 2 : vector<4x16x16xf32>, i32 -> vector<4x16x16xf32>
    %c1_i32 = arith.constant 1 : i32
    %31 = tpu.dynamic_rotate %27 by %c1_i32 dim 2 : vector<4x16x16xf32>, i32 -> vector<4x16x16xf32>
    %32 = arith.subf %30, %31 : vector<4x16x16xf32>
    %cst_18 = arith.constant 5.000000e-01 : f32
    %33 = vector.broadcast %cst_18 : f32 to vector<4x16x16xf32>
    %34 = arith.mulf %33, %32 : vector<4x16x16xf32>
    %c15_i32_19 = arith.constant 15 : i32
    %35 = tpu.dynamic_rotate %27 by %c15_i32_19 dim 1 : vector<4x16x16xf32>, i32 -> vector<4x16x16xf32>
    %c1_i32_20 = arith.constant 1 : i32
    %36 = tpu.dynamic_rotate %27 by %c1_i32_20 dim 1 : vector<4x16x16xf32>, i32 -> vector<4x16x16xf32>
    %37 = arith.subf %35, %36 : vector<4x16x16xf32>
    %cst_21 = arith.constant 5.000000e-01 : f32
    %38 = vector.broadcast %cst_21 : f32 to vector<4x16x16xf32>
    %39 = arith.mulf %38, %37 : vector<4x16x16xf32>
    %40 = arith.mulf %34, %34 : vector<4x16x16xf32>
    %41 = arith.mulf %39, %39 : vector<4x16x16xf32>
    %42 = arith.addf %40, %41 : vector<4x16x16xf32>
    %cst_22 = arith.constant 5.000000e-01 : f32
    %43 = vector.broadcast %cst_22 : f32 to vector<4x16x16xf32>
    %44 = arith.mulf %43, %42 : vector<4x16x16xf32>
    %45 = arith.mulf %34, %34 : vector<4x16x16xf32>
    %46 = arith.subf %44, %45 : vector<4x16x16xf32>
    %47 = vector.broadcast %12 : vector<1x16x16xf32> to vector<4x16x16xf32>
    %48 = arith.mulf %47, %46 : vector<4x16x16xf32>
    %49 = arith.mulf %39, %34 : vector<4x16x16xf32>
    %50 = vector.broadcast %23 : vector<1x16x16xf32> to vector<4x16x16xf32>
    %51 = arith.mulf %50, %49 : vector<4x16x16xf32>
    %52 = arith.addf %48, %51 : vector<4x16x16xf32>
    %c15_i32_23 = arith.constant 15 : i32
    %53 = tpu.dynamic_rotate %29 by %c15_i32_23 dim 2 : vector<4x16x16xf32>, i32 -> vector<4x16x16xf32>
    %c1_i32_24 = arith.constant 1 : i32
    %54 = tpu.dynamic_rotate %29 by %c1_i32_24 dim 2 : vector<4x16x16xf32>, i32 -> vector<4x16x16xf32>
    %55 = arith.subf %53, %54 : vector<4x16x16xf32>
    %cst_25 = arith.constant 5.000000e-01 : f32
    %56 = vector.broadcast %cst_25 : f32 to vector<4x16x16xf32>
    %57 = arith.mulf %56, %55 : vector<4x16x16xf32>
    %c15_i32_26 = arith.constant 15 : i32
    %58 = tpu.dynamic_rotate %29 by %c15_i32_26 dim 1 : vector<4x16x16xf32>, i32 -> vector<4x16x16xf32>
    %c1_i32_27 = arith.constant 1 : i32
    %59 = tpu.dynamic_rotate %29 by %c1_i32_27 dim 1 : vector<4x16x16xf32>, i32 -> vector<4x16x16xf32>
    %60 = arith.subf %58, %59 : vector<4x16x16xf32>
    %cst_28 = arith.constant 5.000000e-01 : f32
    %61 = vector.broadcast %cst_28 : f32 to vector<4x16x16xf32>
    %62 = arith.mulf %61, %60 : vector<4x16x16xf32>
    %63 = arith.mulf %57, %57 : vector<4x16x16xf32>
    %64 = arith.mulf %62, %62 : vector<4x16x16xf32>
    %65 = arith.addf %63, %64 : vector<4x16x16xf32>
    %cst_29 = arith.constant 5.000000e-01 : f32
    %66 = vector.broadcast %cst_29 : f32 to vector<4x16x16xf32>
    %67 = arith.mulf %66, %65 : vector<4x16x16xf32>
    %68 = arith.mulf %57, %57 : vector<4x16x16xf32>
    %69 = arith.subf %67, %68 : vector<4x16x16xf32>
    %70 = vector.broadcast %12 : vector<1x16x16xf32> to vector<4x16x16xf32>
    %71 = arith.mulf %70, %69 : vector<4x16x16xf32>
    %72 = arith.mulf %62, %57 : vector<4x16x16xf32>
    %73 = vector.broadcast %23 : vector<1x16x16xf32> to vector<4x16x16xf32>
    %74 = arith.mulf %73, %72 : vector<4x16x16xf32>
    %75 = arith.addf %71, %74 : vector<4x16x16xf32>
    %76 = arith.subf %52, %75 : vector<4x16x16xf32>
    %77 = vector.shape_cast %76 : vector<4x16x16xf32> to vector<1x4x16x16xf32>
    %cst_30 = arith.constant dense<0.000000e+00> : vector<1xf32>
    %78 = vector.multi_reduction <add>, %77, %cst_30 [1, 2, 3] : vector<1x4x16x16xf32> to vector<1xf32>
    %79 = vector.shape_cast %78 : vector<1xf32> to vector<1x1x1x1xf32>
    %80 = vector.extract %79[0, 0, 0, 0] : f32 from vector<1x1x1x1xf32>
    %c0_i32_31 = arith.constant 0 : i32
    %81 = vector.broadcast %c0_i32_31 : i32 to vector<1x2xi32>
    %82 = arith.cmpi eq, %24, %81 : vector<1x2xi32>
    %83 = arith.mulf %80, %80 : f32
    %84 = vector.broadcast %83 : f32 to vector<1x2xf32>
    %85 = arith.select %82, %84, %25 : vector<1x2xi1>, vector<1x2xf32>
    %c1 = arith.constant 1 : index
    %c0_32 = arith.constant 0 : index
    %c0_33 = arith.constant 0 : index
    %c0_34 = arith.constant 0 : index
    %86 = vector.load %arg1[%c1, %c0_32, %c0_33, %c0_34] : memref<2x4x16x16xf32, #tpu.memory_space<vmem>>, vector<1x4x16x16xf32>
    %87 = vector.shape_cast %86 : vector<1x4x16x16xf32> to vector<4x16x16xf32>
    %c1_35 = arith.constant 1 : index
    %c0_36 = arith.constant 0 : index
    %c0_37 = arith.constant 0 : index
    %c0_38 = arith.constant 0 : index
    %88 = vector.load %arg2[%c1_35, %c0_36, %c0_37, %c0_38] : memref<2x4x16x16xf32, #tpu.memory_space<vmem>>, vector<1x4x16x16xf32>
    %89 = vector.shape_cast %88 : vector<1x4x16x16xf32> to vector<4x16x16xf32>
    %c15_i32_39 = arith.constant 15 : i32
    %90 = tpu.dynamic_rotate %87 by %c15_i32_39 dim 2 : vector<4x16x16xf32>, i32 -> vector<4x16x16xf32>
    %c1_i32_40 = arith.constant 1 : i32
    %91 = tpu.dynamic_rotate %87 by %c1_i32_40 dim 2 : vector<4x16x16xf32>, i32 -> vector<4x16x16xf32>
    %92 = arith.subf %90, %91 : vector<4x16x16xf32>
    %cst_41 = arith.constant 5.000000e-01 : f32
    %93 = vector.broadcast %cst_41 : f32 to vector<4x16x16xf32>
    %94 = arith.mulf %93, %92 : vector<4x16x16xf32>
    %c15_i32_42 = arith.constant 15 : i32
    %95 = tpu.dynamic_rotate %87 by %c15_i32_42 dim 1 : vector<4x16x16xf32>, i32 -> vector<4x16x16xf32>
    %c1_i32_43 = arith.constant 1 : i32
    %96 = tpu.dynamic_rotate %87 by %c1_i32_43 dim 1 : vector<4x16x16xf32>, i32 -> vector<4x16x16xf32>
    %97 = arith.subf %95, %96 : vector<4x16x16xf32>
    %cst_44 = arith.constant 5.000000e-01 : f32
    %98 = vector.broadcast %cst_44 : f32 to vector<4x16x16xf32>
    %99 = arith.mulf %98, %97 : vector<4x16x16xf32>
    %100 = arith.mulf %94, %94 : vector<4x16x16xf32>
    %101 = arith.mulf %99, %99 : vector<4x16x16xf32>
    %102 = arith.addf %100, %101 : vector<4x16x16xf32>
    %cst_45 = arith.constant 5.000000e-01 : f32
    %103 = vector.broadcast %cst_45 : f32 to vector<4x16x16xf32>
    %104 = arith.mulf %103, %102 : vector<4x16x16xf32>
    %105 = arith.mulf %94, %94 : vector<4x16x16xf32>
    %106 = arith.subf %104, %105 : vector<4x16x16xf32>
    %107 = vector.broadcast %12 : vector<1x16x16xf32> to vector<4x16x16xf32>
    %108 = arith.mulf %107, %106 : vector<4x16x16xf32>
    %109 = arith.mulf %99, %94 : vector<4x16x16xf32>
    %110 = vector.broadcast %23 : vector<1x16x16xf32> to vector<4x16x16xf32>
    %111 = arith.mulf %110, %109 : vector<4x16x16xf32>
    %112 = arith.addf %108, %111 : vector<4x16x16xf32>
    %c15_i32_46 = arith.constant 15 : i32
    %113 = tpu.dynamic_rotate %89 by %c15_i32_46 dim 2 : vector<4x16x16xf32>, i32 -> vector<4x16x16xf32>
    %c1_i32_47 = arith.constant 1 : i32
    %114 = tpu.dynamic_rotate %89 by %c1_i32_47 dim 2 : vector<4x16x16xf32>, i32 -> vector<4x16x16xf32>
    %115 = arith.subf %113, %114 : vector<4x16x16xf32>
    %cst_48 = arith.constant 5.000000e-01 : f32
    %116 = vector.broadcast %cst_48 : f32 to vector<4x16x16xf32>
    %117 = arith.mulf %116, %115 : vector<4x16x16xf32>
    %c15_i32_49 = arith.constant 15 : i32
    %118 = tpu.dynamic_rotate %89 by %c15_i32_49 dim 1 : vector<4x16x16xf32>, i32 -> vector<4x16x16xf32>
    %c1_i32_50 = arith.constant 1 : i32
    %119 = tpu.dynamic_rotate %89 by %c1_i32_50 dim 1 : vector<4x16x16xf32>, i32 -> vector<4x16x16xf32>
    %120 = arith.subf %118, %119 : vector<4x16x16xf32>
    %cst_51 = arith.constant 5.000000e-01 : f32
    %121 = vector.broadcast %cst_51 : f32 to vector<4x16x16xf32>
    %122 = arith.mulf %121, %120 : vector<4x16x16xf32>
    %123 = arith.mulf %117, %117 : vector<4x16x16xf32>
    %124 = arith.mulf %122, %122 : vector<4x16x16xf32>
    %125 = arith.addf %123, %124 : vector<4x16x16xf32>
    %cst_52 = arith.constant 5.000000e-01 : f32
    %126 = vector.broadcast %cst_52 : f32 to vector<4x16x16xf32>
    %127 = arith.mulf %126, %125 : vector<4x16x16xf32>
    %128 = arith.mulf %117, %117 : vector<4x16x16xf32>
    %129 = arith.subf %127, %128 : vector<4x16x16xf32>
    %130 = vector.broadcast %12 : vector<1x16x16xf32> to vector<4x16x16xf32>
    %131 = arith.mulf %130, %129 : vector<4x16x16xf32>
    %132 = arith.mulf %122, %117 : vector<4x16x16xf32>
    %133 = vector.broadcast %23 : vector<1x16x16xf32> to vector<4x16x16xf32>
    %134 = arith.mulf %133, %132 : vector<4x16x16xf32>
    %135 = arith.addf %131, %134 : vector<4x16x16xf32>
    %136 = arith.subf %112, %135 : vector<4x16x16xf32>
    %137 = vector.shape_cast %136 : vector<4x16x16xf32> to vector<1x4x16x16xf32>
    %cst_53 = arith.constant dense<0.000000e+00> : vector<1xf32>
    %138 = vector.multi_reduction <add>, %137, %cst_53 [1, 2, 3] : vector<1x4x16x16xf32> to vector<1xf32>
    %139 = vector.shape_cast %138 : vector<1xf32> to vector<1x1x1x1xf32>
    %140 = vector.extract %139[0, 0, 0, 0] : f32 from vector<1x1x1x1xf32>
    %c1_i32_54 = arith.constant 1 : i32
    %141 = vector.broadcast %c1_i32_54 : i32 to vector<1x2xi32>
    %142 = arith.cmpi eq, %24, %141 : vector<1x2xi32>
    %143 = arith.mulf %140, %140 : f32
    %144 = vector.broadcast %143 : f32 to vector<1x2xf32>
    %145 = arith.select %142, %144, %85 : vector<1x2xi1>, vector<1x2xf32>
    %c0_55 = arith.constant 0 : index
    %c0_56 = arith.constant 0 : index
    %146 = vector.load %arg3[%c0_55, %c0_56] : memref<1x2xf32, #tpu.memory_space<vmem>>, vector<1x2xf32>
    tpu.vector_store %arg3[%c0_55, %c0_56], %145 {strides = array<i32>} : memref<1x2xf32, #tpu.memory_space<vmem>>, vector<1x2xf32>,
    return
  }
  func.func @transform_0(%arg0: i32) -> (i32, i32, i32, i32) {
    %c0_i32 = arith.constant 0 : i32
    %c0_i32_0 = arith.constant 0 : i32
    %c0_i32_1 = arith.constant 0 : i32
    %c0_i32_2 = arith.constant 0 : i32
    return %arg0, %c0_i32, %c0_i32_0, %c0_i32_1 : i32, i32, i32, i32
  }
  func.func @transform_1(%arg0: i32) -> (i32, i32, i32, i32) {
    %c0_i32 = arith.constant 0 : i32
    %c0_i32_0 = arith.constant 0 : i32
    %c0_i32_1 = arith.constant 0 : i32
    %c0_i32_2 = arith.constant 0 : i32
    return %arg0, %c0_i32, %c0_i32_0, %c0_i32_1 : i32, i32, i32, i32
  }
  func.func @transform_2(%arg0: i32) -> (i32, i32) {
    %c0_i32 = arith.constant 0 : i32
    %c0_i32_0 = arith.constant 0 : i32
    return %arg0, %c0_i32 : i32, i32
  }
}

</mosaic_0001>

<llo_original>
// kernel: tpu_custom_call.1
$region0: #{tpu_custom_call.1}
  #allocation0 [shape = 'u32[]', space=smem, size = 0x4, offset = 0x4, fixed_abs, tag = 'smem constant byte address 0x4 - core index']
  #allocation1 [shape = 'u32[72,128]{1,0:T(1,128)}', space=vmem, size = 0x9000, scoped, tag = 'internal scratch']
  %s0 = inlined_call_operand.hbm [shape: f32[2,4,16,16], index: 0, kind: input, shape index: {}]
  %s1 = inlined_call_operand.hbm [shape: f32[2,4,16,16], index: 1, kind: input, shape index: {}]
  %s2 = inlined_call_operand.hbm [shape: f32[1,2], index: 2, kind: output, shape index: {}]
  %s3 = sld [smem:[#allocation0]]
  $region26: #{tpu_custom_call.1} parent=0
    _
  %s5 = ssub.s32 1, %s3
  %s6 = scalar_select 0, %s5, %s3
  $region1: #{tpu_custom_call.1} parent=0
    #allocation2 [shape = 'u8[65536]{0}', space=vmem, size = 0x10000, scoped, tag = 'input window, operand 0, single buffered']
    #allocation3 [shape = 's32[1]{0}', space=sflag, size = 0x4, scoped, tag = 'scoped memory for tpu_custom_call.1']
    #allocation4 [shape = 's32[1]{0}', space=sflag, size = 0x4, scoped, tag = 'scoped memory for tpu_custom_call.1']
    #allocation5 [shape = 'u8[65536]{0}', space=vmem, size = 0x10000, scoped, tag = 'input window, operand 1, single buffered']
    #allocation6 [shape = 's32[1]{0}', space=sflag, size = 0x4, scoped, tag = 'scoped memory for tpu_custom_call.1']
    #allocation7 [shape = 'u8[512]{0}', space=vmem, size = 0x400, scoped, tag = 'output window, operand 0, single buffered']
    %7 = vsyncpa [#allocation3], 0
    %8 = vsyncpa [#allocation6], 0
    %9 = vsyncpa [#allocation4], 0
    // Predicated region
    $region2: #{tpu_custom_call.1} parent=1 // pred_check
      _
    $region3: #{tpu_custom_call.1} parent=1 // pred_check_branch
      %11 = sbr.rel (0) target = $region5
    $region4: #{tpu_custom_call.1} parent=1 // pred_region
      %13 = vsyncadd [#allocation3], 0
      %s14 = sshll.u32 %s0, 4
      %s15 = int_to_ptr.hbm [resolvable:$true] %s14
      %s16 = sshll.u32 [#allocation2], 4
      %s17 = int_to_ptr.vmem [resolvable:$true] %s16
      %22 = dma.hbm_to_vmem [thread:$0]  %s15, 2048, %s17, [#allocation3], 128, 128, 8
    $region5: #{tpu_custom_call.1} parent=1 // pred_fallthru
      _
    // Predicated region
    $region6: #{tpu_custom_call.1} parent=1 // pred_check
      _
    $region7: #{tpu_custom_call.1} parent=1 // pred_check_branch
      %24 = sbr.rel (0) target = $region9
    $region8: #{tpu_custom_call.1} parent=1 // pred_region
      %26 = vsyncadd [#allocation6], 0
      %s27 = sshll.u32 %s1, 4
      %s28 = int_to_ptr.hbm [resolvable:$true] %s27
      %s29 = sshll.u32 [#allocation5], 4
      %s30 = int_to_ptr.vmem [resolvable:$true] %s29
      %35 = dma.hbm_to_vmem [thread:$0]  %s28, 2048, %s30, [#allocation6], 128, 128, 8
    $region9: #{tpu_custom_call.1} parent=1 // pred_fallthru
      _
    // Predicated region
    $region10: #{tpu_custom_call.1} parent=1 // pred_check
      _
    $region11: #{tpu_custom_call.1} parent=1 // pred_check_branch
      %37 = sbr.rel (0) target = $region13
    $region12: #{tpu_custom_call.1} parent=1 // pred_region
      %39 = dma.done [#allocation3], 2048
    $region13: #{tpu_custom_call.1} parent=1 // pred_fallthru
      _
    // Predicated region
    $region14: #{tpu_custom_call.1} parent=1 // pred_check
      _
    $region15: #{tpu_custom_call.1} parent=1 // pred_check_branch
      %41 = sbr.rel (0) target = $region17
    $region16: #{tpu_custom_call.1} parent=1 // pred_region
      %43 = dma.done [#allocation6], 2048
    $region17: #{tpu_custom_call.1} parent=1 // pred_fallthru
      _
    %v44 = vlaneseq
    %v45 = vand.u32 %v44, 127
    %v46 = vlaneseq
    %v47 = vshrl.u32 %v46, 7
    %v48 = vadd.s32 %v47, 8
    %vm49 = vcmp.eq.s32.totalorder %v45, 15
    %v50 = vsel %vm49, 1.0, 0.0
    %vm51 = vcmp.eq.s32.totalorder %v45, 0
    %v52 = vsel %vm51, 1.0, 0.0
    %v53 = vsub.f32 %v50, %v52
    %vm54 = vcmp.eq.s32.totalorder %v47, 0
    %vm55 = vcmp.eq.s32.totalorder %v48, 0
    %v56 = vsel %vm54, 1.0, 0.0
    %v57 = vsel %vm55, 1.0, 0.0
    %vm58 = vcmp.eq.s32.totalorder %v47, 15
    %vm59 = vcmp.eq.s32.totalorder %v48, 15
    %v60 = vsel %vm58, 1.0, 0.0
    %v61 = vsel %vm59, 1.0, 0.0
    %v62 = vsub.f32 %v56, %v60
    %v63 = vsub.f32 %v57, %v61
    %v64 = vld [vmem:[#allocation2] sm:$0xff]
    %v65 = vld [vmem:[#allocation2 + $0x8] sm:$0xff]
    %v66 = vld [vmem:[#allocation2 + $0x10] sm:$0xff]
    %v67 = vld [vmem:[#allocation2 + $0x18] sm:$0xff]
    %v68 = vld [vmem:[#allocation2 + $0x20] sm:$0xff]
    %v69 = vld [vmem:[#allocation2 + $0x28] sm:$0xff]
    %v70 = vld [vmem:[#allocation2 + $0x30] sm:$0xff]
    %v71 = vld [vmem:[#allocation2 + $0x38] sm:$0xff]
    %v72 = vld [vmem:[#allocation5] sm:$0xff]
    %v73 = vld [vmem:[#allocation5 + $0x8] sm:$0xff]
    %v74 = vld [vmem:[#allocation5 + $0x10] sm:$0xff]
    %v75 = vld [vmem:[#allocation5 + $0x18] sm:$0xff]
    %v76 = vld [vmem:[#allocation5 + $0x20] sm:$0xff]
    %v77 = vld [vmem:[#allocation5 + $0x28] sm:$0xff]
    %v78 = vld [vmem:[#allocation5 + $0x30] sm:$0xff]
    %v79 = vld [vmem:[#allocation5 + $0x38] sm:$0xff]
    %vm80 = vcmask 1047680
    %81 = vrot.lane.b32.xlu0 %v64, 16
    %v82 = vpop.permute.xlu0 %81
    %v83 = vsel %vm80, %v82, %v64
    %84 = vrot.lane.b32.xlu0 %v65, 16
    %v85 = vpop.permute.xlu0 %84
    %v86 = vsel %vm80, %v85, %v65
    %87 = vrot.lane.b32.xlu0 %v66, 16
    %v88 = vpop.permute.xlu0 %87
    %v89 = vsel %vm80, %v88, %v66
    %90 = vrot.lane.b32.xlu0 %v67, 16
    %v91 = vpop.permute.xlu0 %90
    %v92 = vsel %vm80, %v91, %v67
    %93 = vrot.lane.b32.xlu0 %v68, 16
    %v94 = vpop.permute.xlu0 %93
    %v95 = vsel %vm80, %v94, %v68
    %96 = vrot.lane.b32.xlu0 %v69, 16
    %v97 = vpop.permute.xlu0 %96
    %v98 = vsel %vm80, %v97, %v69
    %99 = vrot.lane.b32.xlu0 %v70, 16
    %v100 = vpop.permute.xlu0 %99
    %v101 = vsel %vm80, %v100, %v70
    %102 = vrot.lane.b32.xlu0 %v71, 16
    %v103 = vpop.permute.xlu0 %102
    %v104 = vsel %vm80, %v103, %v71
    %105 = vrot.lane.b32.xlu0 %v83, 16
    %v106 = vpop.permute.xlu0 %105
    %107 = vrot.lane.b32.xlu0 %v86, 16
    %v108 = vpop.permute.xlu0 %107
    %109 = vrot.lane.b32.xlu0 %v89, 16
    %v110 = vpop.permute.xlu0 %109
    %111 = vrot.lane.b32.xlu0 %v92, 16
    %v112 = vpop.permute.xlu0 %111
    %113 = vrot.lane.b32.xlu0 %v95, 16
    %v114 = vpop.permute.xlu0 %113
    %115 = vrot.lane.b32.xlu0 %v98, 16
    %v116 = vpop.permute.xlu0 %115
    %117 = vrot.lane.b32.xlu0 %v101, 16
    %v118 = vpop.permute.xlu0 %117
    %119 = vrot.lane.b32.xlu0 %v104, 16
    %v120 = vpop.permute.xlu0 %119
    %v121 = vsel %vm80, %v106, %v64
    %v122 = vsel %vm80, %v108, %v65
    %v123 = vsel %vm80, %v110, %v66
    %v124 = vsel %vm80, %v112, %v67
    %v125 = vsel %vm80, %v114, %v68
    %v126 = vsel %vm80, %v116, %v69
    %v127 = vsel %vm80, %v118, %v70
    %v128 = vsel %vm80, %v120, %v71
    %137 = vrot.lane.b32.xlu0 %v121, 114
    %v138 = vpop.permute.xlu0 %137
    %139 = vrot.lane.b32.xlu0 %v122, 114
    %v140 = vpop.permute.xlu0 %139
    %141 = vrot.lane.b32.xlu0 %v123, 114
    %v142 = vpop.permute.xlu0 %141
    %143 = vrot.lane.b32.xlu0 %v124, 114
    %v144 = vpop.permute.xlu0 %143
    %145 = vrot.lane.b32.xlu0 %v125, 114
    %v146 = vpop.permute.xlu0 %145
    %147 = vrot.lane.b32.xlu0 %v126, 114
    %v148 = vpop.permute.xlu0 %147
    %149 = vrot.lane.b32.xlu0 %v127, 114
    %v150 = vpop.permute.xlu0 %149
    %151 = vrot.lane.b32.xlu0 %v128, 114
    %v152 = vpop.permute.xlu0 %151
    %v161 = vsub.f32 %v121, %v138
    %v162 = vsub.f32 %v122, %v140
    %v163 = vsub.f32 %v123, %v142
    %v164 = vsub.f32 %v124, %v144
    %v165 = vsub.f32 %v125, %v146
    %v166 = vsub.f32 %v126, %v148
    %v167 = vsub.f32 %v127, %v150
    %v168 = vsub.f32 %v128, %v152
    %v169 = vmul.f32 %v161, 0.5
    %v170 = vmul.f32 %v162, 0.5
    %v171 = vmul.f32 %v163, 0.5
    %v172 = vmul.f32 %v164, 0.5
    %v173 = vmul.f32 %v165, 0.5
    %v174 = vmul.f32 %v166, 0.5
    %v175 = vmul.f32 %v167, 0.5
    %v176 = vmul.f32 %v168, 0.5
    %v177 = vrot.slane %v64, 1
    %v178 = vrot.slane %v66, 1
    %v179 = vrot.slane %v68, 1
    %v180 = vrot.slane %v70, 1
    %v181 = vrot.slane %v65, 1
    %v182 = vrot.slane %v67, 1
    %v183 = vrot.slane %v69, 1
    %v184 = vrot.slane %v71, 1
    %vm185 = vcmp.lt.s32.totalorder %v47, 7
    %v186 = vsel %vm185, %v177, %v181
    %v187 = vsel %vm185, %v178, %v182
    %v188 = vsel %vm185, %v179, %v183
    %v189 = vsel %vm185, %v180, %v184
    %v190 = vsel %vm185, %v181, %v177
    %v191 = vsel %vm185, %v182, %v178
    %v192 = vsel %vm185, %v183, %v179
    %v193 = vsel %vm185, %v184, %v180
    %v194 = vrot.slane %v64, 7
    %v195 = vrot.slane %v66, 7
    %v196 = vrot.slane %v68, 7
    %v197 = vrot.slane %v70, 7
    %v198 = vrot.slane %v65, 7
    %v199 = vrot.slane %v67, 7
    %v200 = vrot.slane %v69, 7
    %v201 = vrot.slane %v71, 7
    %vm202 = vcmp.lt.s32.totalorder %v47, 1
    %v203 = vsel %vm202, %v194, %v198
    %v204 = vsel %vm202, %v195, %v199
    %v205 = vsel %vm202, %v196, %v200
    %v206 = vsel %vm202, %v197, %v201
    %v207 = vsel %vm202, %v198, %v194
    %v208 = vsel %vm202, %v199, %v195
    %v209 = vsel %vm202, %v200, %v196
    %v210 = vsel %vm202, %v201, %v197
    %v211 = vsub.f32 %v186, %v207
    %v212 = vsub.f32 %v190, %v203
    %v213 = vsub.f32 %v187, %v208
    %v214 = vsub.f32 %v191, %v204
    %v215 = vsub.f32 %v188, %v209
    %v216 = vsub.f32 %v192, %v205
    %v217 = vsub.f32 %v189, %v210
    %v218 = vsub.f32 %v193, %v206
    %v219 = vmul.f32 %v211, 0.5
    %v220 = vmul.f32 %v212, 0.5
    %v221 = vmul.f32 %v213, 0.5
    %v222 = vmul.f32 %v214, 0.5
    %v223 = vmul.f32 %v215, 0.5
    %v224 = vmul.f32 %v216, 0.5
    %v225 = vmul.f32 %v217, 0.5
    %v226 = vmul.f32 %v218, 0.5
    %v227 = vmul.f32 %v169, %v169
    %v228 = vmul.f32 %v170, %v170
    %v229 = vmul.f32 %v171, %v171
    %v230 = vmul.f32 %v172, %v172
    %v231 = vmul.f32 %v173, %v173
    %v232 = vmul.f32 %v174, %v174
    %v233 = vmul.f32 %v175, %v175
    %v234 = vmul.f32 %v176, %v176
    %v235 = vmul.f32 %v219, %v219
    %v236 = vmul.f32 %v220, %v220
    %v237 = vmul.f32 %v221, %v221
    %v238 = vmul.f32 %v222, %v222
    %v239 = vmul.f32 %v223, %v223
    %v240 = vmul.f32 %v224, %v224
    %v241 = vmul.f32 %v225, %v225
    %v242 = vmul.f32 %v226, %v226
    %251 = vrot.lane.b32.xlu0 %v235, 1
    %v252 = vpop.permute.xlu0 %251
    %253 = vrot.lane.b32.xlu0 %v236, 1
    %v254 = vpop.permute.xlu0 %253
    %255 = vrot.lane.b32.xlu0 %v237, 1
    %v256 = vpop.permute.xlu0 %255
    %257 = vrot.lane.b32.xlu0 %v238, 1
    %v258 = vpop.permute.xlu0 %257
    %259 = vrot.lane.b32.xlu0 %v239, 1
    %v260 = vpop.permute.xlu0 %259
    %261 = vrot.lane.b32.xlu0 %v240, 1
    %v262 = vpop.permute.xlu0 %261
    %263 = vrot.lane.b32.xlu0 %v241, 1
    %v264 = vpop.permute.xlu0 %263
    %265 = vrot.lane.b32.xlu0 %v242, 1
    %v266 = vpop.permute.xlu0 %265
    %v275 = vadd.f32 %v227, %v252
    %v276 = vadd.f32 %v228, %v254
    %v277 = vadd.f32 %v229, %v256
    %v278 = vadd.f32 %v230, %v258
    %v279 = vadd.f32 %v231, %v260
    %v280 = vadd.f32 %v232, %v262
    %v281 = vadd.f32 %v233, %v264
    %v282 = vadd.f32 %v234, %v266
    %v283 = vmul.f32 %v275, 0.5
    %v284 = vmul.f32 %v276, 0.5
    %v285 = vmul.f32 %v277, 0.5
    %v286 = vmul.f32 %v278, 0.5
    %v287 = vmul.f32 %v279, 0.5
    %v288 = vmul.f32 %v280, 0.5
    %v289 = vmul.f32 %v281, 0.5
    %v290 = vmul.f32 %v282, 0.5
    %v291 = vsub.f32 %v283, %v227
    %v292 = vsub.f32 %v284, %v228
    %v293 = vsub.f32 %v285, %v229
    %v294 = vsub.f32 %v286, %v230
    %v295 = vsub.f32 %v287, %v231
    %v296 = vsub.f32 %v288, %v232
    %v297 = vsub.f32 %v289, %v233
    %v298 = vsub.f32 %v290, %v234
    %307 = vrot.lane.b32.xlu0 %v291, 127
    %v308 = vpop.permute.xlu0 %307
    %309 = vrot.lane.b32.xlu0 %v292, 127
    %v310 = vpop.permute.xlu0 %309
    %311 = vrot.lane.b32.xlu0 %v293, 127
    %v312 = vpop.permute.xlu0 %311
    %313 = vrot.lane.b32.xlu0 %v294, 127
    %v314 = vpop.permute.xlu0 %313
    %315 = vrot.lane.b32.xlu0 %v295, 127
    %v316 = vpop.permute.xlu0 %315
    %317 = vrot.lane.b32.xlu0 %v296, 127
    %v318 = vpop.permute.xlu0 %317
    %319 = vrot.lane.b32.xlu0 %v297, 127
    %v320 = vpop.permute.xlu0 %319
    %321 = vrot.lane.b32.xlu0 %v298, 127
    %v322 = vpop.permute.xlu0 %321
    %v331 = vmul.f32 %v53, %v308
    %v332 = vmul.f32 %v53, %v310
    %v333 = vmul.f32 %v53, %v312
    %v334 = vmul.f32 %v53, %v314
    %v335 = vmul.f32 %v53, %v316
    %v336 = vmul.f32 %v53, %v318
    %v337 = vmul.f32 %v53, %v320
    %v338 = vmul.f32 %v53, %v322
    %347 = vrot.lane.b32.xlu0 %v169, 127
    %v348 = vpop.permute.xlu0 %347
    %349 = vrot.lane.b32.xlu0 %v170, 127
    %v350 = vpop.permute.xlu0 %349
    %351 = vrot.lane.b32.xlu0 %v171, 127
    %v352 = vpop.permute.xlu0 %351
    %353 = vrot.lane.b32.xlu0 %v172, 127
    %v354 = vpop.permute.xlu0 %353
    %355 = vrot.lane.b32.xlu0 %v173, 127
    %v356 = vpop.permute.xlu0 %355
    %357 = vrot.lane.b32.xlu0 %v174, 127
    %v358 = vpop.permute.xlu0 %357
    %359 = vrot.lane.b32.xlu0 %v175, 127
    %v360 = vpop.permute.xlu0 %359
    %361 = vrot.lane.b32.xlu0 %v176, 127
    %v362 = vpop.permute.xlu0 %361
    %v371 = vmul.f32 %v219, %v348
    %v372 = vmul.f32 %v220, %v350
    %v373 = vmul.f32 %v221, %v352
    %v374 = vmul.f32 %v222, %v354
    %v375 = vmul.f32 %v223, %v356
    %v376 = vmul.f32 %v224, %v358
    %v377 = vmul.f32 %v225, %v360
    %v378 = vmul.f32 %v226, %v362
    %v379 = vmul.f32 %v62, %v371
    %v380 = vmul.f32 %v63, %v372
    %v381 = vmul.f32 %v62, %v373
    %v382 = vmul.f32 %v63, %v374
    %v383 = vmul.f32 %v62, %v375
    %v384 = vmul.f32 %v63, %v376
    %v385 = vmul.f32 %v62, %v377
    %v386 = vmul.f32 %v63, %v378
    %v387 = vadd.f32 %v331, %v379
    %v388 = vadd.f32 %v332, %v380
    %v389 = vadd.f32 %v333, %v381
    %v390 = vadd.f32 %v334, %v382
    %v391 = vadd.f32 %v335, %v383
    %v392 = vadd.f32 %v336, %v384
    %v393 = vadd.f32 %v337, %v385
    %v394 = vadd.f32 %v338, %v386
    %395 = vrot.lane.b32.xlu0 %v72, 16
    %v396 = vpop.permute.xlu0 %395
    %v397 = vsel %vm80, %v396, %v72
    %398 = vrot.lane.b32.xlu0 %v73, 16
    %v399 = vpop.permute.xlu0 %398
    %v400 = vsel %vm80, %v399, %v73
    %401 = vrot.lane.b32.xlu0 %v74, 16
    %v402 = vpop.permute.xlu0 %401
    %v403 = vsel %vm80, %v402, %v74
    %404 = vrot.lane.b32.xlu0 %v75, 16
    %v405 = vpop.permute.xlu0 %404
    %v406 = vsel %vm80, %v405, %v75
    %407 = vrot.lane.b32.xlu0 %v76, 16
    %v408 = vpop.permute.xlu0 %407
    %v409 = vsel %vm80, %v408, %v76
    %410 = vrot.lane.b32.xlu0 %v77, 16
    %v411 = vpop.permute.xlu0 %410
    %v412 = vsel %vm80, %v411, %v77
    %413 = vrot.lane.b32.xlu0 %v78, 16
    %v414 = vpop.permute.xlu0 %413
    %v415 = vsel %vm80, %v414, %v78
    %416 = vrot.lane.b32.xlu0 %v79, 16
    %v417 = vpop.permute.xlu0 %416
    %v418 = vsel %vm80, %v417, %v79
    %419 = vrot.lane.b32.xlu0 %v397, 16
    %v420 = vpop.permute.xlu0 %419
    %421 = vrot.lane.b32.xlu0 %v400, 16
    %v422 = vpop.permute.xlu0 %421
    %423 = vrot.lane.b32.xlu0 %v403, 16
    %v424 = vpop.permute.xlu0 %423
    %425 = vrot.lane.b32.xlu0 %v406, 16
    %v426 = vpop.permute.xlu0 %425
    %427 = vrot.lane.b32.xlu0 %v409, 16
    %v428 = vpop.permute.xlu0 %427
    %429 = vrot.lane.b32.xlu0 %v412, 16
    %v430 = vpop.permute.xlu0 %429
    %431 = vrot.lane.b32.xlu0 %v415, 16
    %v432 = vpop.permute.xlu0 %431
    %433 = vrot.lane.b32.xlu0 %v418, 16
    %v434 = vpop.permute.xlu0 %433
    %v435 = vsel %vm80, %v420, %v72
    %v436 = vsel %vm80, %v422, %v73
    %v437 = vsel %vm80, %v424, %v74
    %v438 = vsel %vm80, %v426, %v75
    %v439 = vsel %vm80, %v428, %v76
    %v440 = vsel %vm80, %v430, %v77
    %v441 = vsel %vm80, %v432, %v78
    %v442 = vsel %vm80, %v434, %v79
    %451 = vrot.lane.b32.xlu0 %v435, 114
    %v452 = vpop.permute.xlu0 %451
    %453 = vrot.lane.b32.xlu0 %v436, 114
    %v454 = vpop.permute.xlu0 %453
    %455 = vrot.lane.b32.xlu0 %v437, 114
    %v456 = vpop.permute.xlu0 %455
    %457 = vrot.lane.b32.xlu0 %v438, 114
    %v458 = vpop.permute.xlu0 %457
    %459 = vrot.lane.b32.xlu0 %v439, 114
    %v460 = vpop.permute.xlu0 %459
    %461 = vrot.lane.b32.xlu0 %v440, 114
    %v462 = vpop.permute.xlu0 %461
    %463 = vrot.lane.b32.xlu0 %v441, 114
    %v464 = vpop.permute.xlu0 %463
    %465 = vrot.lane.b32.xlu0 %v442, 114
    %v466 = vpop.permute.xlu0 %465
    %v475 = vsub.f32 %v435, %v452
    %v476 = vsub.f32 %v436, %v454
    %v477 = vsub.f32 %v437, %v456
    %v478 = vsub.f32 %v438, %v458
    %v479 = vsub.f32 %v439, %v460
    %v480 = vsub.f32 %v440, %v462
    %v481 = vsub.f32 %v441, %v464
    %v482 = vsub.f32 %v442, %v466
    %v483 = vmul.f32 %v475, 0.5
    %v484 = vmul.f32 %v476, 0.5
    %v485 = vmul.f32 %v477, 0.5
    %v486 = vmul.f32 %v478, 0.5
    %v487 = vmul.f32 %v479, 0.5
    %v488 = vmul.f32 %v480, 0.5
    %v489 = vmul.f32 %v481, 0.5
    %v490 = vmul.f32 %v482, 0.5
    %v491 = vrot.slane %v72, 1
    %v492 = vrot.slane %v74, 1
    %v493 = vrot.slane %v76, 1
    %v494 = vrot.slane %v78, 1
    %v495 = vrot.slane %v73, 1
    %v496 = vrot.slane %v75, 1
    %v497 = vrot.slane %v77, 1
    %v498 = vrot.slane %v79, 1
    %v499 = vsel %vm185, %v491, %v495
    %v500 = vsel %vm185, %v492, %v496
    %v501 = vsel %vm185, %v493, %v497
    %v502 = vsel %vm185, %v494, %v498
    %v503 = vsel %vm185, %v495, %v491
    %v504 = vsel %vm185, %v496, %v492
    %v505 = vsel %vm185, %v497, %v493
    %v506 = vsel %vm185, %v498, %v494
    %v507 = vrot.slane %v72, 7
    %v508 = vrot.slane %v74, 7
    %v509 = vrot.slane %v76, 7
    %v510 = vrot.slane %v78, 7
    %v511 = vrot.slane %v73, 7
    %v512 = vrot.slane %v75, 7
    %v513 = vrot.slane %v77, 7
    %v514 = vrot.slane %v79, 7
    %v515 = vsel %vm202, %v507, %v511
    %v516 = vsel %vm202, %v508, %v512
    %v517 = vsel %vm202, %v509, %v513
    %v518 = vsel %vm202, %v510, %v514
    %v519 = vsel %vm202, %v511, %v507
    %v520 = vsel %vm202, %v512, %v508
    %v521 = vsel %vm202, %v513, %v509
    %v522 = vsel %vm202, %v514, %v510
    %v523 = vsub.f32 %v499, %v519
    %v524 = vsub.f32 %v503, %v515
    %v525 = vsub.f32 %v500, %v520
    %v526 = vsub.f32 %v504, %v516
    %v527 = vsub.f32 %v501, %v521
    %v528 = vsub.f32 %v505, %v517
    %v529 = vsub.f32 %v502, %v522
    %v530 = vsub.f32 %v506, %v518
    %v531 = vmul.f32 %v523, 0.5
    %v532 = vmul.f32 %v524, 0.5
    %v533 = vmul.f32 %v525, 0.5
    %v534 = vmul.f32 %v526, 0.5
    %v535 = vmul.f32 %v527, 0.5
    %v536 = vmul.f32 %v528, 0.5
    %v537 = vmul.f32 %v529, 0.5
    %v538 = vmul.f32 %v530, 0.5
    %v539 = vmul.f32 %v483, %v483
    %v540 = vmul.f32 %v484, %v484
    %v541 = vmul.f32 %v485, %v485
    %v542 = vmul.f32 %v486, %v486
    %v543 = vmul.f32 %v487, %v487
    %v544 = vmul.f32 %v488, %v488
    %v545 = vmul.f32 %v489, %v489
    %v546 = vmul.f32 %v490, %v490
    %v547 = vmul.f32 %v531, %v531
    %v548 = vmul.f32 %v532, %v532
    %v549 = vmul.f32 %v533, %v533
    %v550 = vmul.f32 %v534, %v534
    %v551 = vmul.f32 %v535, %v535
    %v552 = vmul.f32 %v536, %v536
    %v553 = vmul.f32 %v537, %v537
    %v554 = vmul.f32 %v538, %v538
    %563 = vrot.lane.b32.xlu0 %v547, 1
    %v564 = vpop.permute.xlu0 %563
    %565 = vrot.lane.b32.xlu0 %v548, 1
    %v566 = vpop.permute.xlu0 %565
    %567 = vrot.lane.b32.xlu0 %v549, 1
    %v568 = vpop.permute.xlu0 %567
    %569 = vrot.lane.b32.xlu0 %v550, 1
    %v570 = vpop.permute.xlu0 %569
    %571 = vrot.lane.b32.xlu0 %v551, 1
    %v572 = vpop.permute.xlu0 %571
    %573 = vrot.lane.b32.xlu0 %v552, 1
    %v574 = vpop.permute.xlu0 %573
    %575 = vrot.lane.b32.xlu0 %v553, 1
    %v576 = vpop.permute.xlu0 %575
    %577 = vrot.lane.b32.xlu0 %v554, 1
    %v578 = vpop.permute.xlu0 %577
    %v587 = vadd.f32 %v539, %v564
    %v588 = vadd.f32 %v540, %v566
    %v589 = vadd.f32 %v541, %v568
    %v590 = vadd.f32 %v542, %v570
    %v591 = vadd.f32 %v543, %v572
    %v592 = vadd.f32 %v544, %v574
    %v593 = vadd.f32 %v545, %v576
    %v594 = vadd.f32 %v546, %v578
    %v595 = vmul.f32 %v587, 0.5
    %v596 = vmul.f32 %v588, 0.5
    %v597 = vmul.f32 %v589, 0.5
    %v598 = vmul.f32 %v590, 0.5
    %v599 = vmul.f32 %v591, 0.5
    %v600 = vmul.f32 %v592, 0.5
    %v601 = vmul.f32 %v593, 0.5
    %v602 = vmul.f32 %v594, 0.5
    %v603 = vsub.f32 %v595, %v539
    %v604 = vsub.f32 %v596, %v540
    %v605 = vsub.f32 %v597, %v541
    %v606 = vsub.f32 %v598, %v542
    %v607 = vsub.f32 %v599, %v543
    %v608 = vsub.f32 %v600, %v544
    %v609 = vsub.f32 %v601, %v545
    %v610 = vsub.f32 %v602, %v546
    %619 = vrot.lane.b32.xlu0 %v603, 127
    %v620 = vpop.permute.xlu0 %619
    %621 = vrot.lane.b32.xlu0 %v604, 127
    %v622 = vpop.permute.xlu0 %621
    %623 = vrot.lane.b32.xlu0 %v605, 127
    %v624 = vpop.permute.xlu0 %623
    %625 = vrot.lane.b32.xlu0 %v606, 127
    %v626 = vpop.permute.xlu0 %625
    %627 = vrot.lane.b32.xlu0 %v607, 127
    %v628 = vpop.permute.xlu0 %627
    %629 = vrot.lane.b32.xlu0 %v608, 127
    %v630 = vpop.permute.xlu0 %629
    %631 = vrot.lane.b32.xlu0 %v609, 127
    %v632 = vpop.permute.xlu0 %631
    %633 = vrot.lane.b32.xlu0 %v610, 127
    %v634 = vpop.permute.xlu0 %633
    %v643 = vmul.f32 %v53, %v620
    %v644 = vmul.f32 %v53, %v622
    %v645 = vmul.f32 %v53, %v624
    %v646 = vmul.f32 %v53, %v626
    %v647 = vmul.f32 %v53, %v628
    %v648 = vmul.f32 %v53, %v630
    %v649 = vmul.f32 %v53, %v632
    %v650 = vmul.f32 %v53, %v634
    %659 = vrot.lane.b32.xlu0 %v483, 127
    %v660 = vpop.permute.xlu0 %659
    %661 = vrot.lane.b32.xlu0 %v484, 127
    %v662 = vpop.permute.xlu0 %661
    %663 = vrot.lane.b32.xlu0 %v485, 127
    %v664 = vpop.permute.xlu0 %663
    %665 = vrot.lane.b32.xlu0 %v486, 127
    %v666 = vpop.permute.xlu0 %665
    %667 = vrot.lane.b32.xlu0 %v487, 127
    %v668 = vpop.permute.xlu0 %667
    %669 = vrot.lane.b32.xlu0 %v488, 127
    %v670 = vpop.permute.xlu0 %669
    %671 = vrot.lane.b32.xlu0 %v489, 127
    %v672 = vpop.permute.xlu0 %671
    %673 = vrot.lane.b32.xlu0 %v490, 127
    %v674 = vpop.permute.xlu0 %673
    %v683 = vmul.f32 %v531, %v660
    %v684 = vmul.f32 %v532, %v662
    %v685 = vmul.f32 %v533, %v664
    %v686 = vmul.f32 %v534, %v666
    %v687 = vmul.f32 %v535, %v668
    %v688 = vmul.f32 %v536, %v670
    %v689 = vmul.f32 %v537, %v672
    %v690 = vmul.f32 %v538, %v674
    %v691 = vmul.f32 %v62, %v683
    %v692 = vmul.f32 %v63, %v684
    %v693 = vmul.f32 %v62, %v685
    %v694 = vmul.f32 %v63, %v686
    %v695 = vmul.f32 %v62, %v687
    %v696 = vmul.f32 %v63, %v688
    %v697 = vmul.f32 %v62, %v689
    %v698 = vmul.f32 %v63, %v690
    %v699 = vadd.f32 %v643, %v691
    %v700 = vadd.f32 %v644, %v692
    %v701 = vadd.f32 %v645, %v693
    %v702 = vadd.f32 %v646, %v694
    %v703 = vadd.f32 %v647, %v695
    %v704 = vadd.f32 %v648, %v696
    %v705 = vadd.f32 %v649, %v697
    %v706 = vadd.f32 %v650, %v698
    %v707 = vsub.f32 %v387, %v699
    %v708 = vsub.f32 %v388, %v700
    %v709 = vsub.f32 %v389, %v701
    %v710 = vsub.f32 %v390, %v702
    %v711 = vsub.f32 %v391, %v703
    %v712 = vsub.f32 %v392, %v704
    %v713 = vsub.f32 %v393, %v705
    %v714 = vsub.f32 %v394, %v706
    %vm715 = vcmask 130048
    %v716 = vsel %vm715, %v707, 0.0
    %v717 = vsel %vm715, %v708, 0.0
    %v718 = vadd.f32 %v716, %v717
    %v719 = vsel %vm715, %v709, 0.0
    %v720 = vadd.f32 %v718, %v719
    %v721 = vsel %vm715, %v710, 0.0
    %v722 = vadd.f32 %v720, %v721
    %v723 = vsel %vm715, %v711, 0.0
    %v724 = vadd.f32 %v722, %v723
    %v725 = vsel %vm715, %v712, 0.0
    %v726 = vadd.f32 %v724, %v725
    %v727 = vsel %vm715, %v713, 0.0
    %v728 = vadd.f32 %v726, %v727
    %v729 = vsel %vm715, %v714, 0.0
    %v730 = vadd.f32 %v728, %v729
    %731 = vadd.xlane.f32.xlu0 %v730
    %v732 = vpop.xlane.xlu0 %731
    %v733 = vrot.slane %v732, 4
    %v734 = vadd.f32 %v732, %v733
    %v735 = vrot.slane %v734, 2
    %v736 = vadd.f32 %v734, %v735
    %v737 = vrot.slane %v736, 1
    %v738 = vadd.f32 %v736, %v737
    %s739 = vtos %v738
    %s740 = smul.f32 %s739, %s739
    %v741 = vstv %s740
    %v742 = vsel %vm51, %v741, 0.0
    %s743 = scalar_lea.vmem [#allocation2], 64
    %v744 = vld [vmem:[%s743] sm:$0xff]
    %v745 = vld [vmem:[%s743 + $0x8] sm:$0xff]
    %v746 = vld [vmem:[%s743 + $0x10] sm:$0xff]
    %v747 = vld [vmem:[%s743 + $0x18] sm:$0xff]
    %v748 = vld [vmem:[%s743 + $0x20] sm:$0xff]
    %v749 = vld [vmem:[%s743 + $0x28] sm:$0xff]
    %v750 = vld [vmem:[%s743 + $0x30] sm:$0xff]
    %v751 = vld [vmem:[%s743 + $0x38] sm:$0xff]
    %s752 = scalar_lea.vmem [#allocation5], 64
    %v753 = vld [vmem:[%s752] sm:$0xff]
    %v754 = vld [vmem:[%s752 + $0x8] sm:$0xff]
    %v755 = vld [vmem:[%s752 + $0x10] sm:$0xff]
    %v756 = vld [vmem:[%s752 + $0x18] sm:$0xff]
    %v757 = vld [vmem:[%s752 + $0x20] sm:$0xff]
    %v758 = vld [vmem:[%s752 + $0x28] sm:$0xff]
    %v759 = vld [vmem:[%s752 + $0x30] sm:$0xff]
    %v760 = vld [vmem:[%s752 + $0x38] sm:$0xff]
    %761 = vrot.lane.b32.xlu0 %v744, 16
    %v762 = vpop.permute.xlu0 %761
    %v763 = vsel %vm80, %v762, %v744
    %764 = vrot.lane.b32.xlu0 %v745, 16
    %v765 = vpop.permute.xlu0 %764
    %v766 = vsel %vm80, %v765, %v745
    %767 = vrot.lane.b32.xlu0 %v746, 16
    %v768 = vpop.permute.xlu0 %767
    %v769 = vsel %vm80, %v768, %v746
    %770 = vrot.lane.b32.xlu0 %v747, 16
    %v771 = vpop.permute.xlu0 %770
    %v772 = vsel %vm80, %v771, %v747
    %773 = vrot.lane.b32.xlu0 %v748, 16
    %v774 = vpop.permute.xlu0 %773
    %v775 = vsel %vm80, %v774, %v748
    %776 = vrot.lane.b32.xlu0 %v749, 16
    %v777 = vpop.permute.xlu0 %776
    %v778 = vsel %vm80, %v777, %v749
    %779 = vrot.lane.b32.xlu0 %v750, 16
    %v780 = vpop.permute.xlu0 %779
    %v781 = vsel %vm80, %v780, %v750
    %782 = vrot.lane.b32.xlu0 %v751, 16
    %v783 = vpop.permute.xlu0 %782
    %v784 = vsel %vm80, %v783, %v751
    %785 = vrot.lane.b32.xlu0 %v763, 16
    %v786 = vpop.permute.xlu0 %785
    %787 = vrot.lane.b32.xlu0 %v766, 16
    %v788 = vpop.permute.xlu0 %787
    %789 = vrot.lane.b32.xlu0 %v769, 16
    %v790 = vpop.permute.xlu0 %789
    %791 = vrot.lane.b32.xlu0 %v772, 16
    %v792 = vpop.permute.xlu0 %791
    %793 = vrot.lane.b32.xlu0 %v775, 16
    %v794 = vpop.permute.xlu0 %793
    %795 = vrot.lane.b32.xlu0 %v778, 16
    %v796 = vpop.permute.xlu0 %795
    %797 = vrot.lane.b32.xlu0 %v781, 16
    %v798 = vpop.permute.xlu0 %797
    %799 = vrot.lane.b32.xlu0 %v784, 16
    %v800 = vpop.permute.xlu0 %799
    %v801 = vsel %vm80, %v786, %v744
    %v802 = vsel %vm80, %v788, %v745
    %v803 = vsel %vm80, %v790, %v746
    %v804 = vsel %vm80, %v792, %v747
    %v805 = vsel %vm80, %v794, %v748
    %v806 = vsel %vm80, %v796, %v749
    %v807 = vsel %vm80, %v798, %v750
    %v808 = vsel %vm80, %v800, %v751
    %817 = vrot.lane.b32.xlu0 %v801, 114
    %v818 = vpop.permute.xlu0 %817
    %819 = vrot.lane.b32.xlu0 %v802, 114
    %v820 = vpop.permute.xlu0 %819
    %821 = vrot.lane.b32.xlu0 %v803, 114
    %v822 = vpop.permute.xlu0 %821
    %823 = vrot.lane.b32.xlu0 %v804, 114
    %v824 = vpop.permute.xlu0 %823
    %825 = vrot.lane.b32.xlu0 %v805, 114
    %v826 = vpop.permute.xlu0 %825
    %827 = vrot.lane.b32.xlu0 %v806, 114
    %v828 = vpop.permute.xlu0 %827
    %829 = vrot.lane.b32.xlu0 %v807, 114
    %v830 = vpop.permute.xlu0 %829
    %831 = vrot.lane.b32.xlu0 %v808, 114
    %v832 = vpop.permute.xlu0 %831
    %v841 = vsub.f32 %v801, %v818
    %v842 = vsub.f32 %v802, %v820
    %v843 = vsub.f32 %v803, %v822
    %v844 = vsub.f32 %v804, %v824
    %v845 = vsub.f32 %v805, %v826
    %v846 = vsub.f32 %v806, %v828
    %v847 = vsub.f32 %v807, %v830
    %v848 = vsub.f32 %v808, %v832
    %v849 = vmul.f32 %v841, 0.5
    %v850 = vmul.f32 %v842, 0.5
    %v851 = vmul.f32 %v843, 0.5
    %v852 = vmul.f32 %v844, 0.5
    %v853 = vmul.f32 %v845, 0.5
    %v854 = vmul.f32 %v846, 0.5
    %v855 = vmul.f32 %v847, 0.5
    %v856 = vmul.f32 %v848, 0.5
    %v857 = vrot.slane %v744, 1
    %v858 = vrot.slane %v746, 1
    %v859 = vrot.slane %v748, 1
    %v860 = vrot.slane %v750, 1
    %v861 = vrot.slane %v745, 1
    %v862 = vrot.slane %v747, 1
    %v863 = vrot.slane %v749, 1
    %v864 = vrot.slane %v751, 1
    %v865 = vsel %vm185, %v857, %v861
    %v866 = vsel %vm185, %v858, %v862
    %v867 = vsel %vm185, %v859, %v863
    %v868 = vsel %vm185, %v860, %v864
    %v869 = vsel %vm185, %v861, %v857
    %v870 = vsel %vm185, %v862, %v858
    %v871 = vsel %vm185, %v863, %v859
    %v872 = vsel %vm185, %v864, %v860
    %v873 = vrot.slane %v744, 7
    %v874 = vrot.slane %v746, 7
    %v875 = vrot.slane %v748, 7
    %v876 = vrot.slane %v750, 7
    %v877 = vrot.slane %v745, 7
    %v878 = vrot.slane %v747, 7
    %v879 = vrot.slane %v749, 7
    %v880 = vrot.slane %v751, 7
    %v881 = vsel %vm202, %v873, %v877
    %v882 = vsel %vm202, %v874, %v878
    %v883 = vsel %vm202, %v875, %v879
    %v884 = vsel %vm202, %v876, %v880
    %v885 = vsel %vm202, %v877, %v873
    %v886 = vsel %vm202, %v878, %v874
    %v887 = vsel %vm202, %v879, %v875
    %v888 = vsel %vm202, %v880, %v876
    %v889 = vsub.f32 %v865, %v885
    %v890 = vsub.f32 %v869, %v881
    %v891 = vsub.f32 %v866, %v886
    %v892 = vsub.f32 %v870, %v882
    %v893 = vsub.f32 %v867, %v887
    %v894 = vsub.f32 %v871, %v883
    %v895 = vsub.f32 %v868, %v888
    %v896 = vsub.f32 %v872, %v884
    %v897 = vmul.f32 %v889, 0.5
    %v898 = vmul.f32 %v890, 0.5
    %v899 = vmul.f32 %v891, 0.5
    %v900 = vmul.f32 %v892, 0.5
    %v901 = vmul.f32 %v893, 0.5
    %v902 = vmul.f32 %v894, 0.5
    %v903 = vmul.f32 %v895, 0.5
    %v904 = vmul.f32 %v896, 0.5
    %v905 = vmul.f32 %v849, %v849
    %v906 = vmul.f32 %v850, %v850
    %v907 = vmul.f32 %v851, %v851
    %v908 = vmul.f32 %v852, %v852
    %v909 = vmul.f32 %v853, %v853
    %v910 = vmul.f32 %v854, %v854
    %v911 = vmul.f32 %v855, %v855
    %v912 = vmul.f32 %v856, %v856
    %v913 = vmul.f32 %v897, %v897
    %v914 = vmul.f32 %v898, %v898
    %v915 = vmul.f32 %v899, %v899
    %v916 = vmul.f32 %v900, %v900
    %v917 = vmul.f32 %v901, %v901
    %v918 = vmul.f32 %v902, %v902
    %v919 = vmul.f32 %v903, %v903
    %v920 = vmul.f32 %v904, %v904
    %929 = vrot.lane.b32.xlu0 %v913, 1
    %v930 = vpop.permute.xlu0 %929
    %931 = vrot.lane.b32.xlu0 %v914, 1
    %v932 = vpop.permute.xlu0 %931
    %933 = vrot.lane.b32.xlu0 %v915, 1
    %v934 = vpop.permute.xlu0 %933
    %935 = vrot.lane.b32.xlu0 %v916, 1
    %v936 = vpop.permute.xlu0 %935
    %937 = vrot.lane.b32.xlu0 %v917, 1
    %v938 = vpop.permute.xlu0 %937
    %939 = vrot.lane.b32.xlu0 %v918, 1
    %v940 = vpop.permute.xlu0 %939
    %941 = vrot.lane.b32.xlu0 %v919, 1
    %v942 = vpop.permute.xlu0 %941
    %943 = vrot.lane.b32.xlu0 %v920, 1
    %v944 = vpop.permute.xlu0 %943
    %v953 = vadd.f32 %v905, %v930
    %v954 = vadd.f32 %v906, %v932
    %v955 = vadd.f32 %v907, %v934
    %v956 = vadd.f32 %v908, %v936
    %v957 = vadd.f32 %v909, %v938
    %v958 = vadd.f32 %v910, %v940
    %v959 = vadd.f32 %v911, %v942
    %v960 = vadd.f32 %v912, %v944
    %v961 = vmul.f32 %v953, 0.5
    %v962 = vmul.f32 %v954, 0.5
    %v963 = vmul.f32 %v955, 0.5
    %v964 = vmul.f32 %v956, 0.5
    %v965 = vmul.f32 %v957, 0.5
    %v966 = vmul.f32 %v958, 0.5
    %v967 = vmul.f32 %v959, 0.5
    %v968 = vmul.f32 %v960, 0.5
    %v969 = vsub.f32 %v961, %v905
    %v970 = vsub.f32 %v962, %v906
    %v971 = vsub.f32 %v963, %v907
    %v972 = vsub.f32 %v964, %v908
    %v973 = vsub.f32 %v965, %v909
    %v974 = vsub.f32 %v966, %v910
    %v975 = vsub.f32 %v967, %v911
    %v976 = vsub.f32 %v968, %v912
    %985 = vrot.lane.b32.xlu0 %v969, 127
    %v986 = vpop.permute.xlu0 %985
    %987 = vrot.lane.b32.xlu0 %v970, 127
    %v988 = vpop.permute.xlu0 %987
    %989 = vrot.lane.b32.xlu0 %v971, 127
    %v990 = vpop.permute.xlu0 %989
    %991 = vrot.lane.b32.xlu0 %v972, 127
    %v992 = vpop.permute.xlu0 %991
    %993 = vrot.lane.b32.xlu0 %v973, 127
    %v994 = vpop.permute.xlu0 %993
    %995 = vrot.lane.b32.xlu0 %v974, 127
    %v996 = vpop.permute.xlu0 %995
    %997 = vrot.lane.b32.xlu0 %v975, 127
    %v998 = vpop.permute.xlu0 %997
    %999 = vrot.lane.b32.xlu0 %v976, 127
    %v1000 = vpop.permute.xlu0 %999
    %v1009 = vmul.f32 %v53, %v986
    %v1010 = vmul.f32 %v53, %v988
    %v1011 = vmul.f32 %v53, %v990
    %v1012 = vmul.f32 %v53, %v992
    %v1013 = vmul.f32 %v53, %v994
    %v1014 = vmul.f32 %v53, %v996
    %v1015 = vmul.f32 %v53, %v998
    %v1016 = vmul.f32 %v53, %v1000
    %1025 = vrot.lane.b32.xlu0 %v849, 127
    %v1026 = vpop.permute.xlu0 %1025
    %1027 = vrot.lane.b32.xlu0 %v850, 127
    %v1028 = vpop.permute.xlu0 %1027
    %1029 = vrot.lane.b32.xlu0 %v851, 127
    %v1030 = vpop.permute.xlu0 %1029
    %1031 = vrot.lane.b32.xlu0 %v852, 127
    %v1032 = vpop.permute.xlu0 %1031
    %1033 = vrot.lane.b32.xlu0 %v853, 127
    %v1034 = vpop.permute.xlu0 %1033
    %1035 = vrot.lane.b32.xlu0 %v854, 127
    %v1036 = vpop.permute.xlu0 %1035
    %1037 = vrot.lane.b32.xlu0 %v855, 127
    %v1038 = vpop.permute.xlu0 %1037
    %1039 = vrot.lane.b32.xlu0 %v856, 127
    %v1040 = vpop.permute.xlu0 %1039
    %v1049 = vmul.f32 %v897, %v1026
    %v1050 = vmul.f32 %v898, %v1028
    %v1051 = vmul.f32 %v899, %v1030
    %v1052 = vmul.f32 %v900, %v1032
    %v1053 = vmul.f32 %v901, %v1034
    %v1054 = vmul.f32 %v902, %v1036
    %v1055 = vmul.f32 %v903, %v1038
    %v1056 = vmul.f32 %v904, %v1040
    %v1057 = vmul.f32 %v62, %v1049
    %v1058 = vmul.f32 %v63, %v1050
    %v1059 = vmul.f32 %v62, %v1051
    %v1060 = vmul.f32 %v63, %v1052
    %v1061 = vmul.f32 %v62, %v1053
    %v1062 = vmul.f32 %v63, %v1054
    %v1063 = vmul.f32 %v62, %v1055
    %v1064 = vmul.f32 %v63, %v1056
    %v1065 = vadd.f32 %v1009, %v1057
    %v1066 = vadd.f32 %v1010, %v1058
    %v1067 = vadd.f32 %v1011, %v1059
    %v1068 = vadd.f32 %v1012, %v1060
    %v1069 = vadd.f32 %v1013, %v1061
    %v1070 = vadd.f32 %v1014, %v1062
    %v1071 = vadd.f32 %v1015, %v1063
    %v1072 = vadd.f32 %v1016, %v1064
    %1073 = vrot.lane.b32.xlu0 %v753, 16
    %v1074 = vpop.permute.xlu0 %1073
    %v1075 = vsel %vm80, %v1074, %v753
    %1076 = vrot.lane.b32.xlu0 %v754, 16
    %v1077 = vpop.permute.xlu0 %1076
    %v1078 = vsel %vm80, %v1077, %v754
    %1079 = vrot.lane.b32.xlu0 %v755, 16
    %v1080 = vpop.permute.xlu0 %1079
    %v1081 = vsel %vm80, %v1080, %v755
    %1082 = vrot.lane.b32.xlu0 %v756, 16
    %v1083 = vpop.permute.xlu0 %1082
    %v1084 = vsel %vm80, %v1083, %v756
    %1085 = vrot.lane.b32.xlu0 %v757, 16
    %v1086 = vpop.permute.xlu0 %1085
    %v1087 = vsel %vm80, %v1086, %v757
    %1088 = vrot.lane.b32.xlu0 %v758, 16
    %v1089 = vpop.permute.xlu0 %1088
    %v1090 = vsel %vm80, %v1089, %v758
    %1091 = vrot.lane.b32.xlu0 %v759, 16
    %v1092 = vpop.permute.xlu0 %1091
    %v1093 = vsel %vm80, %v1092, %v759
    %1094 = vrot.lane.b32.xlu0 %v760, 16
    %v1095 = vpop.permute.xlu0 %1094
    %v1096 = vsel %vm80, %v1095, %v760
    %1097 = vrot.lane.b32.xlu0 %v1075, 16
    %v1098 = vpop.permute.xlu0 %1097
    %1099 = vrot.lane.b32.xlu0 %v1078, 16
    %v1100 = vpop.permute.xlu0 %1099
    %1101 = vrot.lane.b32.xlu0 %v1081, 16
    %v1102 = vpop.permute.xlu0 %1101
    %1103 = vrot.lane.b32.xlu0 %v1084, 16
    %v1104 = vpop.permute.xlu0 %1103
    %1105 = vrot.lane.b32.xlu0 %v1087, 16
    %v1106 = vpop.permute.xlu0 %1105
    %1107 = vrot.lane.b32.xlu0 %v1090, 16
    %v1108 = vpop.permute.xlu0 %1107
    %1109 = vrot.lane.b32.xlu0 %v1093, 16
    %v1110 = vpop.permute.xlu0 %1109
    %1111 = vrot.lane.b32.xlu0 %v1096, 16
    %v1112 = vpop.permute.xlu0 %1111
    %v1113 = vsel %vm80, %v1098, %v753
    %v1114 = vsel %vm80, %v1100, %v754
    %v1115 = vsel %vm80, %v1102, %v755
    %v1116 = vsel %vm80, %v1104, %v756
    %v1117 = vsel %vm80, %v1106, %v757
    %v1118 = vsel %vm80, %v1108, %v758
    %v1119 = vsel %vm80, %v1110, %v759
    %v1120 = vsel %vm80, %v1112, %v760
    %1129 = vrot.lane.b32.xlu0 %v1113, 114
    %v1130 = vpop.permute.xlu0 %1129
    %1131 = vrot.lane.b32.xlu0 %v1114, 114
    %v1132 = vpop.permute.xlu0 %1131
    %1133 = vrot.lane.b32.xlu0 %v1115, 114
    %v1134 = vpop.permute.xlu0 %1133
    %1135 = vrot.lane.b32.xlu0 %v1116, 114
    %v1136 = vpop.permute.xlu0 %1135
    %1137 = vrot.lane.b32.xlu0 %v1117, 114
    %v1138 = vpop.permute.xlu0 %1137
    %1139 = vrot.lane.b32.xlu0 %v1118, 114
    %v1140 = vpop.permute.xlu0 %1139
    %1141 = vrot.lane.b32.xlu0 %v1119, 114
    %v1142 = vpop.permute.xlu0 %1141
    %1143 = vrot.lane.b32.xlu0 %v1120, 114
    %v1144 = vpop.permute.xlu0 %1143
    %v1153 = vsub.f32 %v1113, %v1130
    %v1154 = vsub.f32 %v1114, %v1132
    %v1155 = vsub.f32 %v1115, %v1134
    %v1156 = vsub.f32 %v1116, %v1136
    %v1157 = vsub.f32 %v1117, %v1138
    %v1158 = vsub.f32 %v1118, %v1140
    %v1159 = vsub.f32 %v1119, %v1142
    %v1160 = vsub.f32 %v1120, %v1144
    %v1161 = vmul.f32 %v1153, 0.5
    %v1162 = vmul.f32 %v1154, 0.5
    %v1163 = vmul.f32 %v1155, 0.5
    %v1164 = vmul.f32 %v1156, 0.5
    %v1165 = vmul.f32 %v1157, 0.5
    %v1166 = vmul.f32 %v1158, 0.5
    %v1167 = vmul.f32 %v1159, 0.5
    %v1168 = vmul.f32 %v1160, 0.5
    %v1169 = vrot.slane %v753, 1
    %v1170 = vrot.slane %v755, 1
    %v1171 = vrot.slane %v757, 1
    %v1172 = vrot.slane %v759, 1
    %v1173 = vrot.slane %v754, 1
    %v1174 = vrot.slane %v756, 1
    %v1175 = vrot.slane %v758, 1
    %v1176 = vrot.slane %v760, 1
    %v1177 = vsel %vm185, %v1169, %v1173
    %v1178 = vsel %vm185, %v1170, %v1174
    %v1179 = vsel %vm185, %v1171, %v1175
    %v1180 = vsel %vm185, %v1172, %v1176
    %v1181 = vsel %vm185, %v1173, %v1169
    %v1182 = vsel %vm185, %v1174, %v1170
    %v1183 = vsel %vm185, %v1175, %v1171
    %v1184 = vsel %vm185, %v1176, %v1172
    %v1185 = vrot.slane %v753, 7
    %v1186 = vrot.slane %v755, 7
    %v1187 = vrot.slane %v757, 7
    %v1188 = vrot.slane %v759, 7
    %v1189 = vrot.slane %v754, 7
    %v1190 = vrot.slane %v756, 7
    %v1191 = vrot.slane %v758, 7
    %v1192 = vrot.slane %v760, 7
    %v1193 = vsel %vm202, %v1185, %v1189
    %v1194 = vsel %vm202, %v1186, %v1190
    %v1195 = vsel %vm202, %v1187, %v1191
    %v1196 = vsel %vm202, %v1188, %v1192
    %v1197 = vsel %vm202, %v1189, %v1185
    %v1198 = vsel %vm202, %v1190, %v1186
    %v1199 = vsel %vm202, %v1191, %v1187
    %v1200 = vsel %vm202, %v1192, %v1188
    %v1201 = vsub.f32 %v1177, %v1197
    %v1202 = vsub.f32 %v1181, %v1193
    %v1203 = vsub.f32 %v1178, %v1198
    %v1204 = vsub.f32 %v1182, %v1194
    %v1205 = vsub.f32 %v1179, %v1199
    %v1206 = vsub.f32 %v1183, %v1195
    %v1207 = vsub.f32 %v1180, %v1200
    %v1208 = vsub.f32 %v1184, %v1196
    %v1209 = vmul.f32 %v1201, 0.5
    %v1210 = vmul.f32 %v1202, 0.5
    %v1211 = vmul.f32 %v1203, 0.5
    %v1212 = vmul.f32 %v1204, 0.5
    %v1213 = vmul.f32 %v1205, 0.5
    %v1214 = vmul.f32 %v1206, 0.5
    %v1215 = vmul.f32 %v1207, 0.5
    %v1216 = vmul.f32 %v1208, 0.5
    %v1217 = vmul.f32 %v1161, %v1161
    %v1218 = vmul.f32 %v1162, %v1162
    %v1219 = vmul.f32 %v1163, %v1163
    %v1220 = vmul.f32 %v1164, %v1164
    %v1221 = vmul.f32 %v1165, %v1165
    %v1222 = vmul.f32 %v1166, %v1166
    %v1223 = vmul.f32 %v1167, %v1167
    %v1224 = vmul.f32 %v1168, %v1168
    %v1225 = vmul.f32 %v1209, %v1209
    %v1226 = vmul.f32 %v1210, %v1210
    %v1227 = vmul.f32 %v1211, %v1211
    %v1228 = vmul.f32 %v1212, %v1212
    %v1229 = vmul.f32 %v1213, %v1213
    %v1230 = vmul.f32 %v1214, %v1214
    %v1231 = vmul.f32 %v1215, %v1215
    %v1232 = vmul.f32 %v1216, %v1216
    %1241 = vrot.lane.b32.xlu0 %v1225, 1
    %v1242 = vpop.permute.xlu0 %1241
    %1243 = vrot.lane.b32.xlu0 %v1226, 1
    %v1244 = vpop.permute.xlu0 %1243
    %1245 = vrot.lane.b32.xlu0 %v1227, 1
    %v1246 = vpop.permute.xlu0 %1245
    %1247 = vrot.lane.b32.xlu0 %v1228, 1
    %v1248 = vpop.permute.xlu0 %1247
    %1249 = vrot.lane.b32.xlu0 %v1229, 1
    %v1250 = vpop.permute.xlu0 %1249
    %1251 = vrot.lane.b32.xlu0 %v1230, 1
    %v1252 = vpop.permute.xlu0 %1251
    %1253 = vrot.lane.b32.xlu0 %v1231, 1
    %v1254 = vpop.permute.xlu0 %1253
    %1255 = vrot.lane.b32.xlu0 %v1232, 1
    %v1256 = vpop.permute.xlu0 %1255
    %v1265 = vadd.f32 %v1217, %v1242
    %v1266 = vadd.f32 %v1218, %v1244
    %v1267 = vadd.f32 %v1219, %v1246
    %v1268 = vadd.f32 %v1220, %v1248
    %v1269 = vadd.f32 %v1221, %v1250
    %v1270 = vadd.f32 %v1222, %v1252
    %v1271 = vadd.f32 %v1223, %v1254
    %v1272 = vadd.f32 %v1224, %v1256
    %v1273 = vmul.f32 %v1265, 0.5
    %v1274 = vmul.f32 %v1266, 0.5
    %v1275 = vmul.f32 %v1267, 0.5
    %v1276 = vmul.f32 %v1268, 0.5
    %v1277 = vmul.f32 %v1269, 0.5
    %v1278 = vmul.f32 %v1270, 0.5
    %v1279 = vmul.f32 %v1271, 0.5
    %v1280 = vmul.f32 %v1272, 0.5
    %v1281 = vsub.f32 %v1273, %v1217
    %v1282 = vsub.f32 %v1274, %v1218
    %v1283 = vsub.f32 %v1275, %v1219
    %v1284 = vsub.f32 %v1276, %v1220
    %v1285 = vsub.f32 %v1277, %v1221
    %v1286 = vsub.f32 %v1278, %v1222
    %v1287 = vsub.f32 %v1279, %v1223
    %v1288 = vsub.f32 %v1280, %v1224
    %1297 = vrot.lane.b32.xlu0 %v1281, 127
    %v1298 = vpop.permute.xlu0 %1297
    %1299 = vrot.lane.b32.xlu0 %v1282, 127
    %v1300 = vpop.permute.xlu0 %1299
    %1301 = vrot.lane.b32.xlu0 %v1283, 127
    %v1302 = vpop.permute.xlu0 %1301
    %1303 = vrot.lane.b32.xlu0 %v1284, 127
    %v1304 = vpop.permute.xlu0 %1303
    %1305 = vrot.lane.b32.xlu0 %v1285, 127
    %v1306 = vpop.permute.xlu0 %1305
    %1307 = vrot.lane.b32.xlu0 %v1286, 127
    %v1308 = vpop.permute.xlu0 %1307
    %1309 = vrot.lane.b32.xlu0 %v1287, 127
    %v1310 = vpop.permute.xlu0 %1309
    %1311 = vrot.lane.b32.xlu0 %v1288, 127
    %v1312 = vpop.permute.xlu0 %1311
    %v1321 = vmul.f32 %v53, %v1298
    %v1322 = vmul.f32 %v53, %v1300
    %v1323 = vmul.f32 %v53, %v1302
    %v1324 = vmul.f32 %v53, %v1304
    %v1325 = vmul.f32 %v53, %v1306
    %v1326 = vmul.f32 %v53, %v1308
    %v1327 = vmul.f32 %v53, %v1310
    %v1328 = vmul.f32 %v53, %v1312
    %1337 = vrot.lane.b32.xlu0 %v1161, 127
    %v1338 = vpop.permute.xlu0 %1337
    %1339 = vrot.lane.b32.xlu0 %v1162, 127
    %v1340 = vpop.permute.xlu0 %1339
    %1341 = vrot.lane.b32.xlu0 %v1163, 127
    %v1342 = vpop.permute.xlu0 %1341
    %1343 = vrot.lane.b32.xlu0 %v1164, 127
    %v1344 = vpop.permute.xlu0 %1343
    %1345 = vrot.lane.b32.xlu0 %v1165, 127
    %v1346 = vpop.permute.xlu0 %1345
    %1347 = vrot.lane.b32.xlu0 %v1166, 127
    %v1348 = vpop.permute.xlu0 %1347
    %1349 = vrot.lane.b32.xlu0 %v1167, 127
    %v1350 = vpop.permute.xlu0 %1349
    %1351 = vrot.lane.b32.xlu0 %v1168, 127
    %v1352 = vpop.permute.xlu0 %1351
    %v1361 = vmul.f32 %v1209, %v1338
    %v1362 = vmul.f32 %v1210, %v1340
    %v1363 = vmul.f32 %v1211, %v1342
    %v1364 = vmul.f32 %v1212, %v1344
    %v1365 = vmul.f32 %v1213, %v1346
    %v1366 = vmul.f32 %v1214, %v1348
    %v1367 = vmul.f32 %v1215, %v1350
    %v1368 = vmul.f32 %v1216, %v1352
    %v1369 = vmul.f32 %v62, %v1361
    %v1370 = vmul.f32 %v63, %v1362
    %v1371 = vmul.f32 %v62, %v1363
    %v1372 = vmul.f32 %v63, %v1364
    %v1373 = vmul.f32 %v62, %v1365
    %v1374 = vmul.f32 %v63, %v1366
    %v1375 = vmul.f32 %v62, %v1367
    %v1376 = vmul.f32 %v63, %v1368
    %v1377 = vadd.f32 %v1321, %v1369
    %v1378 = vadd.f32 %v1322, %v1370
    %v1379 = vadd.f32 %v1323, %v1371
    %v1380 = vadd.f32 %v1324, %v1372
    %v1381 = vadd.f32 %v1325, %v1373
    %v1382 = vadd.f32 %v1326, %v1374
    %v1383 = vadd.f32 %v1327, %v1375
    %v1384 = vadd.f32 %v1328, %v1376
    %v1385 = vsub.f32 %v1065, %v1377
    %v1386 = vsub.f32 %v1066, %v1378
    %v1387 = vsub.f32 %v1067, %v1379
    %v1388 = vsub.f32 %v1068, %v1380
    %v1389 = vsub.f32 %v1069, %v1381
    %v1390 = vsub.f32 %v1070, %v1382
    %v1391 = vsub.f32 %v1071, %v1383
    %v1392 = vsub.f32 %v1072, %v1384
    %v1393 = vsel %vm715, %v1385, 0.0
    %v1394 = vsel %vm715, %v1386, 0.0
    %v1395 = vadd.f32 %v1393, %v1394
    %v1396 = vsel %vm715, %v1387, 0.0
    %v1397 = vadd.f32 %v1395, %v1396
    %v1398 = vsel %vm715, %v1388, 0.0
    %v1399 = vadd.f32 %v1397, %v1398
    %v1400 = vsel %vm715, %v1389, 0.0
    %v1401 = vadd.f32 %v1399, %v1400
    %v1402 = vsel %vm715, %v1390, 0.0
    %v1403 = vadd.f32 %v1401, %v1402
    %v1404 = vsel %vm715, %v1391, 0.0
    %v1405 = vadd.f32 %v1403, %v1404
    %v1406 = vsel %vm715, %v1392, 0.0
    %v1407 = vadd.f32 %v1405, %v1406
    %1408 = vadd.xlane.f32.xlu0 %v1407
    %v1409 = vpop.xlane.xlu0 %1408
    %v1410 = vrot.slane %v1409, 4
    %v1411 = vadd.f32 %v1409, %v1410
    %v1412 = vrot.slane %v1411, 2
    %v1413 = vadd.f32 %v1411, %v1412
    %v1414 = vrot.slane %v1413, 1
    %v1415 = vadd.f32 %v1413, %v1414
    %s1416 = vtos %v1415
    %vm1417 = vcmp.eq.s32.totalorder %v45, 1
    %s1418 = smul.f32 %s1416, %s1416
    %v1419 = vstv %s1418
    %v1420 = vsel %vm1417, %v1419, %v742
    %vm1421 = vcmask 8192
    %1422 = vst.msk [vmem:[#allocation7] sm:$0x1] %vm1421, %v1420
    // Predicated region
    $region18: #{tpu_custom_call.1} parent=1 // pred_check
      _
    $region19: #{tpu_custom_call.1} parent=1 // pred_check_branch
      %1424 = sbr.rel (0) target = $region21
    $region20: #{tpu_custom_call.1} parent=1 // pred_region
      %1426 = vsyncadd [#allocation4], 0
      %s1428 = sshll.u32 [#allocation7], 4
      %s1429 = int_to_ptr.vmem [resolvable:$true] %s1428
      %s1430 = sshll.u32 %s2, 4
      %s1431 = int_to_ptr.hbm [resolvable:$true] %s1430
      %1433 = dma.vmem_to_hbm [thread:$0]  %s1429, 16, %s1431, [#allocation4]
    $region21: #{tpu_custom_call.1} parent=1 // pred_fallthru
      _
    // Predicated region
    $region22: #{tpu_custom_call.1} parent=1 // pred_check
      _
    $region23: #{tpu_custom_call.1} parent=1 // pred_check_branch
      %1435 = sbr.rel (0) target = $region25
    $region24: #{tpu_custom_call.1} parent=1 // pred_region
      %1437 = dma.done [#allocation4], 16
    $region25: #{tpu_custom_call.1} parent=1 // pred_fallthru
      _
    %1438 = vsyncpa [#allocation3], 1
    %1439 = vsyncpa [#allocation6], 1
    %1440 = vsyncpa [#allocation4], 1

</llo_original>
